<compile_context>
chip_gen: v5e
topology: v5e:2x2
jax: 0.10.0
libtpu: 0.0.40
codegen_flags: <defaults>
</compile_context>

<pallas_src>
import functools

import jax
import jax.numpy as jnp
from jax import lax
from jax.experimental import pallas as pl
from jax.experimental.pallas import tpu as pltpu


def _accuracy_kernel(x_ref, labels_ref, out_ref, m_ref, idx_ref, *,
                     n_classes, n_rows, tile_b, tile_c):
    # x_ref:      (tile_b, tile_c) logits tile (native dtype, upcast in-vreg)
    # labels_ref: (tile_b, 1) int32 targets
    # out_ref:    (tile_b, 1) float32 per-sample correctness
    # m_ref:      (tile_b, 1) float32 running max      (VMEM scratch)
    # idx_ref:    (tile_b, 1) int32   running argmax   (VMEM scratch)
    i = pl.program_id(0)            # batch tile
    j = pl.program_id(1)            # class tile (reduction axis)
    n_j = pl.num_programs(1)

    @pl.when(j == 0)
    def _():
        m_ref[...] = jnp.full_like(m_ref, -jnp.inf)
        idx_ref[...] = jnp.full_like(idx_ref, n_classes)   # sentinel, never a label

    x = x_ref[...].astype(jnp.float32)                      # (tile_b, tile_c)
    col = lax.broadcasted_iota(jnp.int32, (tile_b, tile_c), 1) + j * tile_c
    valid = col < n_classes                  # mask padded lanes of last class tile
    x = jnp.where(valid, x, -jnp.inf)

    tile_max = jnp.max(x, axis=1, keepdims=True)            # (tile_b, 1)
    tile_arg = jnp.min(jnp.where((x == tile_max) & valid, col, n_classes),
                       axis=1, keepdims=True)               # first max within tile

    run_max = m_ref[...]
    take_new = tile_max > run_max    # strict ">" keeps earliest index on cross-tile ties
    m_ref[...] = jnp.where(take_new, tile_max, run_max)
    idx_ref[...] = jnp.where(take_new, tile_arg, idx_ref[...])

    @pl.when(j == n_j - 1)
    def _():
        labels = labels_ref[...]                            # (tile_b, 1) int32
        row = lax.broadcasted_iota(jnp.int32, (tile_b, 1), 0) + i * tile_b
        correct = (idx_ref[...] == labels) & (row < n_rows)  # mask padded batch rows
        out_ref[...] = correct.astype(jnp.float32)


def accuracy_per_sequence_length(inputs, labels, *, seq_len: int,
                                 batch_size: int, reduction: str = "mean",
                                 tile_b=None, tile_c=None, use_pallas=None):
    """JAX/Pallas equivalent of AccuracyPerSequenceLength.forward.

    inputs: (T*B, C) logits (any float dtype), labels: (T*B,) integer targets.
    Returns a float32 scalar.
    """
    n_tokens, n_classes = inputs.shape
    n_seq = n_tokens // batch_size
    if n_seq <= seq_len:
        # Static-shape early return, matches the PyTorch tensor(0.0).
        return jnp.float32(0.0)

    # Metadata-only reshapes (no HBM copy); seq_len selection happens in the kernel DMA.
    inputs_r = inputs.reshape((n_seq, batch_size, n_classes))
    labels_r = labels.reshape((n_seq, batch_size)).astype(jnp.int32)

    if use_pallas is None:
        # Per-pallas_call overhead dominates for tiny slabs; let XLA fuse those.
        use_pallas = batch_size * n_classes * inputs.dtype.itemsize >= (128 * 1024)

    if not use_pallas:
        x = inputs_r[seq_len]
        lab = labels_r[seq_len]
        correct = (jnp.argmax(x, axis=1).astype(jnp.int32) == lab).astype(jnp.float32)
        return jnp.mean(correct) if reduction == "mean" else jnp.sum(correct)

    labels_r3 = labels_r.reshape((n_seq, batch_size, 1))

    # Tile selection: lane-dense class tiles, (8,128)-legal blocks, sized well
    # under v7x's 32 MiB default scoped VMEM even double-buffered.
    if tile_c is None:
        tile_c = n_classes if n_classes <= 2048 else 2048   # 2048 % 128 == 0
    if tile_b is None:
        tile_b = batch_size if batch_size <= 256 else 256   # 256 % 8 == 0
    num_b = pl.cdiv(batch_size, tile_b)
    num_c = pl.cdiv(n_classes, tile_c)

    kernel = functools.partial(_accuracy_kernel, n_classes=n_classes,
                               n_rows=batch_size, tile_b=tile_b, tile_c=tile_c)

    itemsize = int(jnp.dtype(inputs.dtype).itemsize)
    cost = pl.CostEstimate(
        flops=2 * batch_size * n_classes,
        transcendentals=0,
        bytes_accessed=batch_size * n_classes * itemsize + 8 * batch_size)

    per_sample = pl.pallas_call(
        kernel,
        out_shape=jax.ShapeDtypeStruct((batch_size, 1), jnp.float32),
        grid_spec=pltpu.PrefetchScalarGridSpec(
            num_scalar_prefetch=0,
            grid=(num_b, num_c),
            in_specs=[
                # seq_len row selection fused into the DMA via the Squeezed dim.
                pl.BlockSpec((pl.Squeezed(), tile_b, tile_c),
                             lambda i, j: (seq_len, i, j)),
                pl.BlockSpec((pl.Squeezed(), tile_b, 1),
                             lambda i, j: (seq_len, i, 0)),
            ],
            out_specs=pl.BlockSpec((tile_b, 1), lambda i, j: (i, 0)),
            scratch_shapes=[pltpu.VMEM((tile_b, 1), jnp.float32),
                            pltpu.VMEM((tile_b, 1), jnp.int32)],
        ),
        compiler_params=pltpu.CompilerParams(
            dimension_semantics=("parallel", "arbitrary"),
            vmem_limit_bytes=32 * 1024 * 1024),
        cost_estimate=cost,
    )(inputs_r, labels_r3)

    total = jnp.sum(per_sample)                 # B tiny values; plain XLA
    if reduction == "mean":
        return total / jnp.float32(batch_size)
    return total


if __name__ == "__main__":
    key = jax.random.PRNGKey(0)
    k1, k2, k3, k4 = jax.random.split(key, 4)

    # Case 1: f32, ragged tiling (B=20 not multiple of tile_b=8, C=320 not
    # multiple of tile_c=128) -> exercises batch/class padding masks.
    T, B, C = 6, 20, 320
    seq_len = 2
    x = jax.random.normal(k1, (T * B, C), dtype=jnp.float32)
    y = jax.random.randint(k2, (T * B,), 0, C, dtype=jnp.int32)

    acc = accuracy_per_sequence_length(x, y, seq_len=seq_len, batch_size=B,
                                       reduction="mean", tile_b=8, tile_c=128,
                                       use_pallas=True)
    acc = jax.block_until_ready(acc)

    x_t = x.reshape(T, B, C)[seq_len]
    y_t = y.reshape(T, B)[seq_len]
    hits = (jnp.argmax(x_t, axis=1).astype(jnp.int32) == y_t).astype(jnp.float32)
    ref_mean = jnp.mean(hits)
    assert jnp.allclose(acc, ref_mean), (acc, ref_mean)

    acc_sum = accuracy_per_sequence_length(x, y, seq_len=seq_len, batch_size=B,
                                           reduction="sum", tile_b=8, tile_c=128,
                                           use_pallas=True)
    assert jnp.allclose(jax.block_until_ready(acc_sum), jnp.sum(hits))

    # Case 2: bf16 logits fed in native dtype (no wrapper f32 copy), default tiles.
    T2, B2, C2 = 8, 16, 256
    x2 = jax.random.normal(k3, (T2 * B2, C2), dtype=jnp.bfloat16)
    y2 = jax.random.randint(k4, (T2 * B2,), 0, C2, dtype=jnp.int32)
    acc2 = accuracy_per_sequence_length(x2, y2, seq_len=5, batch_size=B2,
                                        reduction="mean", use_pallas=True)
    acc2 = jax.block_until_ready(acc2)
    x2_t = x2.reshape(T2, B2, C2)[5]
    y2_t = y2.reshape(T2, B2)[5]
    ref2 = jnp.mean((jnp.argmax(x2_t, axis=1).astype(jnp.int32) == y2_t)
                    .astype(jnp.float32))
    assert jnp.allclose(acc2, ref2), (acc2, ref2)

    # Case 3: tiny-shape auto dispatch (XLA fast path) agrees with Pallas path.
    acc_auto = accuracy_per_sequence_length(x, y, seq_len=seq_len, batch_size=B,
                                            reduction="mean")
    assert jnp.allclose(jax.block_until_ready(acc_auto), ref_mean)

    # Case 4: early-return when the requested sequence position does not exist.
    zero = accuracy_per_sequence_length(x, y, seq_len=T + 3, batch_size=B)
    assert float(zero) == 0.0

    print("KERNEL_OK")
</pallas_src>

<mosaic_0001>
module attributes {stable_mosaic.version = 11 : i64} {
  func.func @_accuracy_kernel(%arg0: i32, %arg1: i32, %arg2: memref<1x8x128xf32, #tpu.memory_space<vmem>>, %arg3: memref<1x8x1xi32, #tpu.memory_space<vmem>>, %arg4: memref<8x1xf32, #tpu.memory_space<vmem>>, %arg5: memref<8x1xf32, #tpu.memory_space<vmem>>, %arg6: memref<8x1xi32, #tpu.memory_space<vmem>>) attributes {dimension_semantics = [#tpu.dimension_semantics<parallel>, #tpu.dimension_semantics<arbitrary>], iteration_bounds = array<i64: 3, 3>, scalar_prefetch = 0 : i64, scratch_operands = 2 : i64, tpu.core_type = #tpu.core_type<tc>, window_params = [{transform_indices = @transform_0, window_bounds = array<i64: 1, 8, 128>}, {transform_indices = @transform_1, window_bounds = array<i64: 1, 8, 1>}, {transform_indices = @transform_2, window_bounds = array<i64: 8, 1>}]} {
    %c0_i32 = arith.constant 0 : i32
    %0 = arith.cmpi eq, %arg1, %c0_i32 : i32
    %1 = arith.extui %0 : i1 to i32
    %c0_i32_0 = arith.constant 0 : i32
    %2 = arith.cmpi ne, %1, %c0_i32_0 : i32
    scf.if %2 {
      %cst_15 = arith.constant 0xFF800000 : f32
      %32 = vector.broadcast %cst_15 : f32 to vector<8x1xf32>
      %c0_16 = arith.constant 0 : index
      %c0_17 = arith.constant 0 : index
      %33 = vector.load %arg5[%c0_16, %c0_17] : memref<8x1xf32, #tpu.memory_space<vmem>>, vector<8x1xf32>
      tpu.vector_store %arg5[%c0_16, %c0_17], %32 {strides = array<i32>} : memref<8x1xf32, #tpu.memory_space<vmem>>, vector<8x1xf32>,
      %c320_i32_18 = arith.constant 320 : i32
      %34 = vector.broadcast %c320_i32_18 : i32 to vector<8x1xi32>
      %c0_19 = arith.constant 0 : index
      %c0_20 = arith.constant 0 : index
      %35 = vector.load %arg6[%c0_19, %c0_20] : memref<8x1xi32, #tpu.memory_space<vmem>>, vector<8x1xi32>
      tpu.vector_store %arg6[%c0_19, %c0_20], %34 {strides = array<i32>} : memref<8x1xi32, #tpu.memory_space<vmem>>, vector<8x1xi32>,
    } else {
    }
    %c0 = arith.constant 0 : index
    %c0_1 = arith.constant 0 : index
    %c0_2 = arith.constant 0 : index
    %3 = vector.load %arg2[%c0, %c0_1, %c0_2] : memref<1x8x128xf32, #tpu.memory_space<vmem>>, vector<1x8x128xf32>
    %4 = vector.shape_cast %3 : vector<1x8x128xf32> to vector<8x128xf32>
    %5 = tpu.iota {dimensions = array<i32: 1>} : vector<8x128xi32>
    %c128_i32 = arith.constant 128 : i32
    %6 = arith.muli %arg1, %c128_i32 : i32
    %7 = vector.broadcast %6 : i32 to vector<8x128xi32>
    %8 = arith.addi %5, %7 : vector<8x128xi32>
    %c320_i32 = arith.constant 320 : i32
    %9 = vector.broadcast %c320_i32 : i32 to vector<8x128xi32>
    %10 = arith.cmpi slt, %8, %9 : vector<8x128xi32>
    %cst = arith.constant 0xFF800000 : f32
    %11 = vector.broadcast %cst : f32 to vector<8x128xf32>
    %12 = arith.select %10, %4, %11 : vector<8x128xi1>, vector<8x128xf32>
    %cst_3 = arith.constant dense<0xFF800000> : vector<8xf32>
    %13 = vector.multi_reduction <maximumf>, %12, %cst_3 [1] : vector<8x128xf32> to vector<8xf32>
    %14 = vector.shape_cast %13 : vector<8xf32> to vector<8x1xf32>
    %15 = vector.broadcast %14 : vector<8x1xf32> to vector<8x128xf32>
    %16 = arith.cmpf oeq, %12, %15 : vector<8x128xf32>
    %17 = arith.andi %16, %10 : vector<8x128xi1>
    %c320_i32_4 = arith.constant 320 : i32
    %18 = vector.broadcast %c320_i32_4 : i32 to vector<8x128xi32>
    %19 = arith.select %17, %8, %18 : vector<8x128xi1>, vector<8x128xi32>
    %cst_5 = arith.constant dense<2147483647> : vector<8xi32>
    %20 = vector.multi_reduction <minsi>, %19, %cst_5 [1] : vector<8x128xi32> to vector<8xi32>
    %21 = vector.shape_cast %20 : vector<8xi32> to vector<8x1xi32>
    %c0_6 = arith.constant 0 : index
    %c0_7 = arith.constant 0 : index
    %22 = vector.load %arg5[%c0_6, %c0_7] : memref<8x1xf32, #tpu.memory_space<vmem>>, vector<8x1xf32>
    %23 = arith.cmpf ogt, %14, %22 : vector<8x1xf32>
    %24 = arith.select %23, %14, %22 : vector<8x1xi1>, vector<8x1xf32>
    %c0_8 = arith.constant 0 : index
    %c0_9 = arith.constant 0 : index
    %25 = vector.load %arg5[%c0_8, %c0_9] : memref<8x1xf32, #tpu.memory_space<vmem>>, vector<8x1xf32>
    tpu.vector_store %arg5[%c0_8, %c0_9], %24 {strides = array<i32>} : memref<8x1xf32, #tpu.memory_space<vmem>>, vector<8x1xf32>,
    %c0_10 = arith.constant 0 : index
    %c0_11 = arith.constant 0 : index
    %26 = vector.load %arg6[%c0_10, %c0_11] : memref<8x1xi32, #tpu.memory_space<vmem>>, vector<8x1xi32>
    %27 = arith.select %23, %21, %26 : vector<8x1xi1>, vector<8x1xi32>
    %c0_12 = arith.constant 0 : index
    %c0_13 = arith.constant 0 : index
    %28 = vector.load %arg6[%c0_12, %c0_13] : memref<8x1xi32, #tpu.memory_space<vmem>>, vector<8x1xi32>
    tpu.vector_store %arg6[%c0_12, %c0_13], %27 {strides = array<i32>} : memref<8x1xi32, #tpu.memory_space<vmem>>, vector<8x1xi32>,
    %c2_i32 = arith.constant 2 : i32
    %29 = arith.cmpi eq, %arg1, %c2_i32 : i32
    %30 = arith.extui %29 : i1 to i32
    %c0_i32_14 = arith.constant 0 : i32
    %31 = arith.cmpi ne, %30, %c0_i32_14 : i32
    scf.if %31 {
      %c0_15 = arith.constant 0 : index
      %c0_16 = arith.constant 0 : index
      %c0_17 = arith.constant 0 : index
      %32 = vector.load %arg3[%c0_15, %c0_16, %c0_17] : memref<1x8x1xi32, #tpu.memory_space<vmem>>, vector<1x8x1xi32>
      %33 = vector.shape_cast %32 : vector<1x8x1xi32> to vector<8x1xi32>
      %34 = tpu.iota {dimensions = array<i32: 0>} : vector<8x1xi32>
      %c8_i32 = arith.constant 8 : i32
      %35 = arith.muli %arg0, %c8_i32 : i32
      %36 = vector.broadcast %35 : i32 to vector<8x1xi32>
      %37 = arith.addi %34, %36 : vector<8x1xi32>
      %c0_18 = arith.constant 0 : index
      %c0_19 = arith.constant 0 : index
      %38 = vector.load %arg6[%c0_18, %c0_19] : memref<8x1xi32, #tpu.memory_space<vmem>>, vector<8x1xi32>
      %39 = arith.cmpi eq, %38, %33 : vector<8x1xi32>
      %c20_i32 = arith.constant 20 : i32
      %40 = vector.broadcast %c20_i32 : i32 to vector<8x1xi32>
      %41 = arith.cmpi slt, %37, %40 : vector<8x1xi32>
      %42 = arith.andi %39, %41 : vector<8x1xi1>
      %43 = arith.extui %42 : vector<8x1xi1> to vector<8x1xi32>
      %44 = arith.sitofp %43 : vector<8x1xi32> to vector<8x1xf32>
      %c0_20 = arith.constant 0 : index
      %c0_21 = arith.constant 0 : index
      %45 = vector.load %arg4[%c0_20, %c0_21] : memref<8x1xf32, #tpu.memory_space<vmem>>, vector<8x1xf32>
      tpu.vector_store %arg4[%c0_20, %c0_21], %44 {strides = array<i32>} : memref<8x1xf32, #tpu.memory_space<vmem>>, vector<8x1xf32>,
    } else {
    }
    return
  }
  func.func @transform_0(%arg0: i32, %arg1: i32) -> (i32, i32, i32) {
    %c2_i32 = arith.constant 2 : i32
    %c0_i32 = arith.constant 0 : i32
    return %c2_i32, %arg0, %arg1 : i32, i32, i32
  }
  func.func @transform_1(%arg0: i32, %arg1: i32) -> (i32, i32, i32) {
    %c2_i32 = arith.constant 2 : i32
    %c0_i32 = arith.constant 0 : i32
    %c0_i32_0 = arith.constant 0 : i32
    return %c2_i32, %arg0, %c0_i32 : i32, i32, i32
  }
  func.func @transform_2(%arg0: i32, %arg1: i32) -> (i32, i32) {
    %c0_i32 = arith.constant 0 : i32
    %c0_i32_0 = arith.constant 0 : i32
    return %arg0, %c0_i32 : i32, i32
  }
}

</mosaic_0001>

<llo_original>
// kernel: tpu_custom_call.1
$region0: #{tpu_custom_call.1}
  #allocation0 [shape = 'u32[]', space=smem, size = 0x4, offset = 0x4, fixed_abs, tag = 'smem constant byte address 0x4 - core index']
  #allocation1 [shape = 'u32[72,128]{1,0:T(1,128)}', space=vmem, size = 0x9000, scoped, tag = 'internal scratch']
  #allocation2 [shape = 'f32[8,1]{1,0:T(8,128)}', space=vmem, size = 0x1000, scoped, tag = 'scratch operand']
  #allocation3 [shape = 's32[8,1]{1,0:T(8,128)}', space=vmem, size = 0x1000, scoped, tag = 'scratch operand']
  %s0 = inlined_call_operand.hbm [shape: f32[6,20,320], index: 0, kind: input, shape index: {}]
  %s1 = inlined_call_operand.vmem [shape: s32[6,20,1], index: 1, kind: input, shape index: {}]
  %s2 = inlined_call_operand.vmem [shape: f32[20,1], index: 2, kind: output, shape index: {}]
  %s3 = sld [smem:[#allocation0]]
  $region53: #{tpu_custom_call.1} parent=0
    _
  %s5 = ssub.s32 1, %s3
  %s6 = scalar_select 0, %s5, %s3
  $region1: #{tpu_custom_call.1} parent=0
    #allocation4 [shape = 'u8[8192]{0}', space=vmem, size = 0x2000, scoped, tag = 'input window, operand 0']
    #allocation5 [shape = 's32[2]{0}', space=sflag, size = 0x8, scoped, tag = 'scoped memory for tpu_custom_call.1']
    %7 = vsyncpa [#allocation5], 0
    %s8 = scalar_lea.sflag [#allocation5], 1
    %9 = vsyncpa %s8, 0
    loop: start=0, step=1, limit=11
    $region2: #{tpu_custom_call.1} parent=1 // loop_pre_header
      _
    $region3: #{tpu_custom_call.1} parent=1 // loop_header
      %s11 = sphi 0, %s15
      %p12 = scmp.ge.s32.totalorder %s11, 11
      %s18 = sphi 0, %s30
      %s19 = sphi 0, %s26
      %s20 = sphi 0, %s18
      %s21 = sphi 0, %s19
      %s22 = sphi 0, %s20
      %s23 = sphi 0, %s21
      %s35 = sphi 0, %s37
      %s38 = sphi 0, %s35
      %s39 = sphi 0, %s38
      %s55 = sphi 0, %s39
      %s61 = sphi 0, %s63
      %s64 = sphi 0, %s61
      %s65 = sphi 0, %s64
      %s81 = sphi 0, %s65
      %s87 = sphi 0, %s89
      %s90 = sphi 0, %s87
      %s91 = sphi 0, %s90
      %s107 = sphi 0, %s91
    $region4: #{tpu_custom_call.1} parent=1 // loop_header_branch
      %14 = sbr.rel (%p12) target = $region8
    $region5: #{tpu_custom_call.1} parent=1 // loop_body
      %s16 = ssub.s32 %s11, 1
      %s17 = ssub.s32 %s11, 2
      %s24 = sadd.s32 1, %s19
      %p25 = scmp.ge.s32.totalorder %s24, 3
      %s26 = scalar_select %p25, 0, %s24
      %s27 = sadd.s32 1, %s18
      %s28 = scalar_select %p25, %s27, %s18
      %p29 = scmp.ge.s32.totalorder %s28, 3
      %s30 = scalar_select %p29, 0, %s28
      %s31 = ssub.s32 %s18, %s30
      %s32 = ssub.s32 %s19, %s26
      %s33 = sor.u32 %s31, %s32
      %p34 = scmp.eq.s32.totalorder %s33, 0
      %s36 = sadd.s32 %s35, 1
      %s37 = scalar_select %p34, %s35, %s36
      %p40 = pneg %p34
      %p41 = scmp.eq.s32.totalorder %s11, 8
      %p42 = por %p40, %p41
      %p43 = scmp.ne.s32.totalorder %s35, %s38
      %p44 = scmp.eq.s32.totalorder %s11, 0
      %p45 = por %p43, %p44
      %p46 = scmp.ne.s32.totalorder %s35, %s38
      %p47 = scmp.eq.s32.totalorder %s16, 8
      %p48 = por %p46, %p47
      %p49 = scmp.ne.s32.totalorder %s38, %s39
      %p50 = scmp.eq.s32.totalorder %s16, 0
      %p51 = por %p49, %p50
      %p52 = scmp.ne.s32.totalorder %s38, %s39
      %p53 = scmp.eq.s32.totalorder %s17, 8
      %p54 = por %p52, %p53
      %p56 = scmp.ne.s32.totalorder %s39, %s55
      %p57 = scmp.eq.s32.totalorder %s17, 0
      %p58 = por %p56, %p57
      %s59 = ssub.s32 %s18, %s30
      %p60 = scmp.eq.s32.totalorder %s59, 0
      %s62 = sadd.s32 %s61, 1
      %s63 = scalar_select %p60, %s61, %s62
      %p66 = pneg %p60
      %p67 = scmp.eq.s32.totalorder %s11, 8
      %p68 = por %p66, %p67
      %p69 = scmp.ne.s32.totalorder %s61, %s64
      %p70 = scmp.eq.s32.totalorder %s11, 0
      %p71 = por %p69, %p70
      %p72 = scmp.ne.s32.totalorder %s61, %s64
      %p73 = scmp.eq.s32.totalorder %s16, 8
      %p74 = por %p72, %p73
      %p75 = scmp.ne.s32.totalorder %s64, %s65
      %p76 = scmp.eq.s32.totalorder %s16, 0
      %p77 = por %p75, %p76
      %p78 = scmp.ne.s32.totalorder %s64, %s65
      %p79 = scmp.eq.s32.totalorder %s17, 8
      %p80 = por %p78, %p79
      %p82 = scmp.ne.s32.totalorder %s65, %s81
      %p83 = scmp.eq.s32.totalorder %s17, 0
      %p84 = por %p82, %p83
      %s85 = ssub.s32 %s18, %s30
      %p86 = scmp.eq.s32.totalorder %s85, 0
      %s88 = sadd.s32 %s87, 1
      %s89 = scalar_select %p86, %s87, %s88
      %p92 = pneg %p86
      %p93 = scmp.eq.s32.totalorder %s11, 8
      %p94 = por %p92, %p93
      %p95 = scmp.ne.s32.totalorder %s87, %s90
      %p96 = scmp.eq.s32.totalorder %s11, 0
      %p97 = por %p95, %p96
      %p98 = scmp.ne.s32.totalorder %s87, %s90
      %p99 = scmp.eq.s32.totalorder %s16, 8
      %p100 = por %p98, %p99
      %p101 = scmp.ne.s32.totalorder %s90, %s91
      %p102 = scmp.eq.s32.totalorder %s16, 0
      %p103 = por %p101, %p102
      %p104 = scmp.ne.s32.totalorder %s90, %s91
      %p105 = scmp.eq.s32.totalorder %s17, 8
      %p106 = por %p104, %p105
      %p108 = scmp.ne.s32.totalorder %s91, %s107
      %p109 = scmp.eq.s32.totalorder %s17, 0
      %p110 = por %p108, %p109
      %p111 = scmp.le.s32.totalorder 1, %s11
      %p112 = scmp.lt.s32.totalorder %s11, 10
      %p113 = pnand %p111, %p112
      %p114 = pneg %p113
      // Predicated region
      $region9: #{tpu_custom_call.1} parent=5 // pred_check
        _
      $region10: #{tpu_custom_call.1} parent=5 // pred_check_branch
        %116 = sbr.rel (%p113) target = $region12
      $region11: #{tpu_custom_call.1} parent=5 // pred_region
        %s117 = ssub.s32 %s11, 1
      $region12: #{tpu_custom_call.1} parent=5 // pred_fallthru
        _
      %p118 = scmp.lt.s32.totalorder %s11, 9
      // Predicated region
      $region13: #{tpu_custom_call.1} parent=5 // pred_check
        %p119 = pneg %p118
      $region14: #{tpu_custom_call.1} parent=5 // pred_check_branch
        %121 = sbr.rel (%p119) target = $region16
      $region15: #{tpu_custom_call.1} parent=5 // pred_region
        // Predicated region
        $region17: #{tpu_custom_call.1} parent=15 // pred_check
          %p122 = pneg %p45
        $region18: #{tpu_custom_call.1} parent=15 // pred_check_branch
          %124 = sbr.rel (%p122) target = $region20
        $region19: #{tpu_custom_call.1} parent=15 // pred_region
          %s125 = sand.u32 %s35, 1
          %s126 = scalar_lea.sflag [#allocation5], %s125
          %s127 = sand.u32 %s35, 1
          %s128 = smul.addr %s127, 8
          %s129 = scalar_lea.vmem [#allocation4], %s128
          %131 = vsyncadd %s126, 0
          %s132 = smul.addr %s18, 3
          %s133 = sadd.s32 %s19, %s132
          %s134 = sadd.s32 %s133, 18
          %s135 = smul.addr %s134, 8
          %s136 = scalar_lea.hbm %s0, %s135
          %s138 = sshll.u32 %s136, 4
          %s139 = int_to_ptr.hbm [resolvable:$true] %s138
          %s140 = sshll.u32 %s129, 4
          %s141 = int_to_ptr.vmem [resolvable:$true] %s140
          %143 = dma.hbm_to_vmem [thread:$0]  %s139, 128, %s141, %s126
        $region20: #{tpu_custom_call.1} parent=15 // pred_fallthru
          _
        // Predicated region
        $region21: #{tpu_custom_call.1} parent=15 // pred_check
          %p144 = pneg %p71
        $region22: #{tpu_custom_call.1} parent=15 // pred_check_branch
          %146 = sbr.rel (%p144) target = $region24
        $region23: #{tpu_custom_call.1} parent=15 // pred_region
          %p147 = scmp.lt.s32.totalorder %s18, 2
          %s148 = scalar_select %p147, %s18, 2
          %s149 = sadd.s32 %s148, 6
          %s150 = smul.addr %s149, 8
          %s151 = scalar_lea.vmem %s1, %s150
        $region24: #{tpu_custom_call.1} parent=15 // pred_fallthru
          _
      $region16: #{tpu_custom_call.1} parent=5 // pred_fallthru
        _
      %p152 = scmp.le.s32.totalorder 1, %s11
      %p153 = scmp.lt.s32.totalorder %s11, 10
      %p154 = pnand %p152, %p153
      %p155 = pneg %p154
      // Predicated region
      $region25: #{tpu_custom_call.1} parent=5 // pred_check
        _
      $region26: #{tpu_custom_call.1} parent=5 // pred_check_branch
        %157 = sbr.rel (%p154) target = $region28
      $region27: #{tpu_custom_call.1} parent=5 // pred_region
        %s158 = ssub.s32 %s11, 1
        %s159 = sand.u32 %s38, 1
        %s160 = scalar_lea.sflag [#allocation5], %s159
        %s161 = sand.u32 %s38, 1
        %s162 = smul.addr %s161, 8
        %s163 = scalar_lea.vmem [#allocation4], %s162
        // Predicated region
        $region29: #{tpu_custom_call.1} parent=27 // pred_check
          %p164 = pneg %p51
        $region30: #{tpu_custom_call.1} parent=27 // pred_check_branch
          %166 = sbr.rel (%p164) target = $region32
        $region31: #{tpu_custom_call.1} parent=27 // pred_region
          %168 = dma.done %s160, 128
        $region32: #{tpu_custom_call.1} parent=27 // pred_fallthru
          _
        %s169 = sand.u32 %s38, 1
        %s170 = scalar_lea.sflag [#allocation5], %s169
        %s171 = sand.u32 %s38, 1
        %s172 = smul.addr %s171, 8
        %s173 = scalar_lea.vmem [#allocation4], %s172
        %p174 = pneg %p51
        %p175 = pneg %p48
        %p176 = scmp.lt.s32.totalorder %s20, 2
        %s177 = scalar_select %p176, %s20, 2
        %s178 = sadd.s32 %s177, 6
        %s179 = smul.addr %s178, 8
        %s180 = scalar_lea.vmem %s1, %s179
        %p181 = pneg %p77
        %p182 = pneg %p74
        %p183 = pneg %p103
        %p184 = pneg %p100
        %p185 = scmp.lt.s32.totalorder %s20, 2
        %s186 = scalar_select %p185, %s20, 2
        %s187 = smul.addr %s186, 8
        %s188 = scalar_lea.vmem %s2, %s187
        %p189 = scmp.lt.s32.totalorder %s20, 2
        %s190 = scalar_select %p189, %s20, 2
        %s191 = sadd.s32 %s190, 6
        %s192 = smul.addr %s191, 8
        %s193 = scalar_lea.vmem %s1, %s192
        %p194 = scmp.lt.s32.totalorder %s20, 2
        %s195 = scalar_select %p194, %s20, 2
        %s196 = smul.addr %s195, 8
        %s197 = scalar_lea.vmem %s2, %s196
        %p198 = scmp.eq.s32.totalorder %s21, 0
        // Predicated region
        $region33: #{tpu_custom_call.1} parent=27 // pred_check
          %p199 = pneg %p198
        $region34: #{tpu_custom_call.1} parent=27 // pred_check_branch
          %201 = sbr.rel (%p199) target = $region36
        $region35: #{tpu_custom_call.1} parent=27 // pred_region
          %vm202 = vcmask 7168
          %203 = vst.msk [vmem:[#allocation2] sm:$0xff] %vm202, -inf
          %204 = vst.msk [vmem:[#allocation3] sm:$0xff] %vm202, 320
        $region36: #{tpu_custom_call.1} parent=27 // pred_fallthru
          _
        %v205 = vld [vmem:[%s163] sm:$0xff]
        %v206 = vlaneseq
        %v207 = vand.u32 %v206, 127
        %s208 = smul.u32 %s21, 128
        %v209 = vstv %s208
        %v210 = vadd.s32 %v207, %v209
        %vm211 = vcmp.lt.s32.totalorder %v210, 320
        %v212 = vsel %vm211, %v205, -inf
        %213 = vmax.xlane.f32.xlu0 %v212
        %v214 = vpop.xlane.xlu0 %213
        %vm215 = vcmp.eq.f32.partialorder %v212, %v214
        %vm216 = vmand %vm215, %vm211
        %v217 = vsel %vm216, %v210, 320
        %v218 = vand.u32 %v217, 65535
        %v219 = vshra.s32 %v217, 16
        %v220 = vcvt.s32.f32 %v218
        %v221 = vcvt.s32.f32 %v219
        %222 = vmin.xlane.f32.xlu0 %v221
        %v223 = vpop.xlane.xlu0 %222
        %vm224 = vcmp.eq.f32.partialorder %v221, %v223
        %v225 = vsel %vm224, %v220, inf
        %226 = vmin.xlane.f32.xlu0 %v225
        %v227 = vpop.xlane.xlu0 %226
        %v228 = vcvt.f32.s32 %v227
        %v229 = vcvt.f32.s32 %v223
        %v230 = vshll.u32 %v229, 16
        %v231 = vadd.s32 %v230, %v228
        %v232 = vld [vmem:[#allocation2] sm:$0xff]
        %vm233 = vcmp.gt.f32.partialorder %v214, %v232
        %v234 = vsel %vm233, %v214, %v232
        %vm235 = vcmask 7168
        %236 = vst.msk [vmem:[#allocation2] sm:$0xff] %vm235, %v234
        %v237 = vld [vmem:[#allocation3] sm:$0xff]
        %v238 = vsel %vm233, %v231, %v237
        %239 = vst.msk [vmem:[#allocation3] sm:$0xff] %vm235, %v238
        %p240 = scmp.eq.s32.totalorder %s21, 2
        // Predicated region
        $region37: #{tpu_custom_call.1} parent=27 // pred_check
          %p241 = pneg %p240
        $region38: #{tpu_custom_call.1} parent=27 // pred_check_branch
          %243 = sbr.rel (%p241) target = $region40
        $region39: #{tpu_custom_call.1} parent=27 // pred_region
          %v244 = vld [vmem:[%s193] sm:$0xff]
          %v245 = vlaneseq
          %v246 = vshrl.u32 %v245, 7
          %s247 = smul.u32 %s20, 8
          %v248 = vstv %s247
          %v249 = vadd.s32 %v246, %v248
          %v250 = vld [vmem:[#allocation3] sm:$0xff]
          %vm251 = vcmp.eq.s32.totalorder %v250, %v244
          %vm252 = vcmp.lt.s32.totalorder %v249, 20
          %vm253 = vmand %vm251, %vm252
          %v254 = vsel %vm253, 1, 0
          %v255 = vcvt.s32.f32 %v254
          %256 = vst.msk [vmem:[%s197] sm:$0xff] %vm235, %v255
        $region40: #{tpu_custom_call.1} parent=27 // pred_fallthru
          _
        %p257 = scmp.lt.s32.totalorder %s20, 2
        %s258 = scalar_select %p257, %s20, 2
        %s259 = smul.addr %s258, 8
        %s260 = scalar_lea.vmem %s2, %s259
        // Predicated region
        $region41: #{tpu_custom_call.1} parent=27 // pred_check
          %p261 = pneg %p100
        $region42: #{tpu_custom_call.1} parent=27 // pred_check_branch
          %263 = sbr.rel (%p261) target = $region44
        $region43: #{tpu_custom_call.1} parent=27 // pred_region
          _
        $region44: #{tpu_custom_call.1} parent=27 // pred_fallthru
          _
      $region28: #{tpu_custom_call.1} parent=5 // pred_fallthru
        _
      %p264 = scmp.le.s32.totalorder 2, %s11
      // Predicated region
      $region45: #{tpu_custom_call.1} parent=5 // pred_check
        %p265 = pneg %p264
      $region46: #{tpu_custom_call.1} parent=5 // pred_check_branch
        %267 = sbr.rel (%p265) target = $region48
      $region47: #{tpu_custom_call.1} parent=5 // pred_region
        %s268 = ssub.s32 %s11, 2
        // Predicated region
        $region49: #{tpu_custom_call.1} parent=47 // pred_check
          %p269 = pneg %p106
        $region50: #{tpu_custom_call.1} parent=47 // pred_check_branch
          %271 = sbr.rel (%p269) target = $region52
        $region51: #{tpu_custom_call.1} parent=47 // pred_region
          %p272 = scmp.lt.s32.totalorder %s22, 2
          %s273 = scalar_select %p272, %s22, 2
          %s274 = smul.addr %s273, 8
          %s275 = scalar_lea.vmem %s2, %s274
        $region52: #{tpu_custom_call.1} parent=47 // pred_fallthru
          _
      $region48: #{tpu_custom_call.1} parent=5 // pred_fallthru
        _
    $region6: #{tpu_custom_call.1} parent=1 // loop_footer
      %s15 = sadd.s32 1, %s11
    $region7: #{tpu_custom_call.1} parent=1 // loop_footer_branch
      %10 = sbr.rel target = $region3
    $region8: #{tpu_custom_call.1} parent=1 // loop_exit
      _
    %276 = vsyncpa [#allocation5], 1
    %s277 = scalar_lea.sflag [#allocation5], 1
    %278 = vsyncpa %s277, 1

</llo_original>
